<compile_context>
chip_gen: v6e
topology: v6e:2x2x1
jax: 0.10.0
libtpu: 0.0.40
codegen_flags: <defaults>
</compile_context>

<pallas_src>
import jax
import jax.numpy as jnp
from jax import lax
from jax.experimental import pallas as pl
from jax.experimental.pallas import tpu as pltpu

# Problem sizes (small, consistent with the module's forward)
B = 2            # batch
C_IN = 4         # input channels
H = W = 16       # spatial
C_OUT = 8        # conv output channels
KH = KW = 3      # conv kernel
K = C_IN * KH * KW            # im2col contraction dim = 36
HW = H * W                    # 256
D = C_OUT * H * W             # flattened feature dim = 2048
NUM_CLASSES = 10

# Packed small-params block layout (single DMA instead of three tiny ones)
PR, PC = 16, 128              # (8,128)-compliant block
HB_COL = 64                   # head bias stored as a column at this lane


def class_model_kernel(p_ref, par_ref, hw_ref, out_ref):
    """Fused conv(im2col matmul, bias folded) + ReLU -> flatten -> linear head.

    p_ref  : [K+1, B*H*W]   im2col patches with a trailing all-ones row
                            (column index = b*HW + h*W + w)
    par_ref: [PR, PC]       packed params:
                              rows 0..7,  cols 0..K    = conv weight | conv bias col
                              rows 0..9,  col  HB_COL  = head bias (as a column)
    hw_ref : [NUM_CLASSES, D]  head weight, natural nn.Linear layout
    out_ref: [NUM_CLASSES, B]  transposed logits (wrapper transposes back)
    """
    par = par_ref[...]
    w2b = par[0:C_OUT, 0:K + 1]                       # [8, 37] weight + bias column
    hb_col = par[0:NUM_CLASSES, HB_COL:HB_COL + 1]    # [10, 1]

    # Conv (+ bias via the ones-row) as a single lane-dense MXU matmul, then ReLU.
    co = jnp.dot(w2b, p_ref[...], preferred_element_type=jnp.float32)  # [8, 512]
    co = jnp.maximum(co, 0.0)

    # PyTorch flatten(start_dim=1) on NCHW conv output -> per-batch CHW order.
    # co[:, b*HW:(b+1)*HW] is [C_OUT, HW]; row-major reshape gives c*HW + h*W + w,
    # exactly matching the reference flatten.  (~16 KiB relayout, verified cheap.)
    feats = [co[:, b * HW:(b + 1) * HW].reshape(1, D) for b in range(B)]
    feat = jnp.concatenate(feats, axis=0)             # [B, D]

    # Head: logits_T = head_w @ feat^T  -> [NUM_CLASSES, B].
    # Putting head_w as LHS makes Mosaic transpose the small feat, not head_w.
    logits_t = lax.dot_general(
        hw_ref[...], feat,
        dimension_numbers=(((1,), (1,)), ((), ())),
        preferred_element_type=jnp.float32)           # [10, B]
    out_ref[...] = (logits_t + hb_col).astype(out_ref.dtype)


def _forward_impl(x_nchw, conv_w_oihw, conv_b, head_w, head_b):
    """x_nchw: [B, C_IN, H, W] float32 (PyTorch layout). Returns [B, NUM_CLASSES]."""
    # --- wrapper-side layout work (fused by XLA under jit) ---
    xp = jnp.pad(x_nchw, ((0, 0), (0, 0), (1, 1), (1, 1)))       # conv padding=1
    taps = [xp[:, :, kh:kh + H, kw:kw + W]                       # [B, C_IN, H, W]
            for kh in range(KH) for kw in range(KW)]
    pat = jnp.stack(taps, axis=2).reshape(B, K, HW)              # k = c_in*9 + kh*3 + kw
    patches = jnp.transpose(pat, (1, 0, 2)).reshape(K, B * HW)   # [36, 512], col = b*HW+s
    patches_aug = jnp.concatenate(
        [patches, jnp.ones((1, B * HW), jnp.float32)], axis=0)   # [37, 512] (+ ones row)

    # Packed params: conv weight with bias column + head bias column.
    w2b = jnp.concatenate([conv_w_oihw.reshape(C_OUT, K),
                           conv_b.reshape(C_OUT, 1)], axis=1)    # [8, 37]
    params = jnp.zeros((PR, PC), jnp.float32)
    params = params.at[0:C_OUT, 0:K + 1].set(w2b)
    params = params.at[0:NUM_CLASSES, HB_COL].set(head_b)

    # head_w stays [NUM_CLASSES, D] = [10, 2048] (no transpose, no lane padding)
    logits_t = pl.pallas_call(
        class_model_kernel,
        out_shape=jax.ShapeDtypeStruct((NUM_CLASSES, B), jnp.float32),
        grid=(1,),
        in_specs=[
            pl.BlockSpec((K + 1, B * HW), lambda i: (0, 0)),
            pl.BlockSpec((PR, PC), lambda i: (0, 0)),
            pl.BlockSpec((NUM_CLASSES, D), lambda i: (0, 0)),
        ],
        out_specs=pl.BlockSpec((NUM_CLASSES, B), lambda i: (0, 0)),
        compiler_params=pltpu.CompilerParams(
            dimension_semantics=("arbitrary",)),
        cost_estimate=pl.CostEstimate(
            flops=385_000, transcendentals=0, bytes_accessed=162_000),
    )(patches_aug, params, head_w)

    return logits_t.T                                            # [B, NUM_CLASSES]


# jit the whole forward so wrapper im2col + pallas_call fuse / dispatch once.
class_model_forward = jax.jit(_forward_impl)


def _reference(x, conv_w, conv_b, head_w, head_b):
    """Pure-JAX reference matching the PyTorch module."""
    y = lax.conv_general_dilated(
        x, conv_w, window_strides=(1, 1), padding=((1, 1), (1, 1)),
        dimension_numbers=('NCHW', 'OIHW', 'NCHW'))
    y = jnp.maximum(y + conv_b.reshape(1, C_OUT, 1, 1), 0.0)
    feat = y.reshape(B, -1)                                      # flatten(start_dim=1)
    return feat @ head_w.T + head_b


if __name__ == "__main__":
    key = jax.random.PRNGKey(0)
    kx, kcw, kcb, khw, khb = jax.random.split(key, 5)

    # deterministic synthetic parameters (PyTorch-style shapes)
    x = jax.random.normal(kx, (B, C_IN, H, W), dtype=jnp.float32)
    conv_w = jax.random.normal(kcw, (C_OUT, C_IN, KH, KW), dtype=jnp.float32) * 0.1
    conv_b = jax.random.normal(kcb, (C_OUT,), dtype=jnp.float32) * 0.1
    head_w = jax.random.normal(khw, (NUM_CLASSES, D), dtype=jnp.float32) * 0.02
    head_b = jax.random.normal(khb, (NUM_CLASSES,), dtype=jnp.float32) * 0.02

    out = class_model_forward(x, conv_w, conv_b, head_w, head_b)
    jax.block_until_ready(out)
    assert out.shape == (B, NUM_CLASSES), out.shape

    ref = _reference(x, conv_w, conv_b, head_w, head_b)
    jax.block_until_ready(ref)
    assert jnp.allclose(out, ref, atol=2e-2, rtol=2e-2), "mismatch vs reference"

    print("KERNEL_OK")
</pallas_src>

<mosaic_0001>
module attributes {stable_mosaic.version = 11 : i64} {
  func.func @class_model_kernel(%arg0: i32, %arg1: memref<37x512xf32, #tpu.memory_space<vmem>>, %arg2: memref<16x128xf32, #tpu.memory_space<vmem>>, %arg3: memref<10x2048xf32, #tpu.memory_space<vmem>>, %arg4: memref<10x2xf32, #tpu.memory_space<vmem>>) attributes {dimension_semantics = [#tpu.dimension_semantics<arbitrary>], iteration_bounds = array<i64: 1>, scalar_prefetch = 0 : i64, scratch_operands = 0 : i64, tpu.core_type = #tpu.core_type<tc>, window_params = [{pipeline_mode = #tpu.pipeline_mode<synchronous>, transform_indices = @transform_0, window_bounds = array<i64: 37, 512>}, {pipeline_mode = #tpu.pipeline_mode<synchronous>, transform_indices = @transform_1, window_bounds = array<i64: 16, 128>}, {pipeline_mode = #tpu.pipeline_mode<synchronous>, transform_indices = @transform_2, window_bounds = array<i64: 10, 2048>}, {pipeline_mode = #tpu.pipeline_mode<synchronous>, transform_indices = @transform_3, window_bounds = array<i64: 10, 2>}]} {
    %c0 = arith.constant 0 : index
    %c0_0 = arith.constant 0 : index
    %0 = vector.load %arg2[%c0, %c0_0] : memref<16x128xf32, #tpu.memory_space<vmem>>, vector<16x128xf32>
    %1 = vector.extract_strided_slice %0 {offsets = [0, 0], sizes = [8, 37], strides = [1, 1]} : vector<16x128xf32> to vector<8x37xf32>
    %2 = vector.extract_strided_slice %0 {offsets = [0, 64], sizes = [10, 1], strides = [1, 1]} : vector<16x128xf32> to vector<10x1xf32>
    %c0_1 = arith.constant 0 : index
    %c0_2 = arith.constant 0 : index
    %3 = vector.load %arg1[%c0_1, %c0_2] : memref<37x512xf32, #tpu.memory_space<vmem>>, vector<37x512xf32>
    %cst = arith.constant dense<0.000000e+00> : vector<8x512xf32>
    %4 = tpu.matmul %1, %3, %cst {dimension_numbers = #tpu.dot_dimension_numbers<[1], [0], [0], [1], [0, 0, 1, 1], [], []>} : vector<8x37xf32>, vector<37x512xf32>, vector<8x512xf32> -> vector<8x512xf32>
    %cst_3 = arith.constant 0.000000e+00 : f32
    %5 = vector.broadcast %cst_3 : f32 to vector<8x512xf32>
    %6 = arith.maximumf %4, %5 : vector<8x512xf32>
    %7 = vector.extract_strided_slice %6 {offsets = [0, 0], sizes = [8, 256], strides = [1, 1]} : vector<8x512xf32> to vector<8x256xf32>
    %8 = vector.shape_cast %7 : vector<8x256xf32> to vector<1x2048xf32>
    %9 = vector.extract_strided_slice %6 {offsets = [0, 256], sizes = [8, 256], strides = [1, 1]} : vector<8x512xf32> to vector<8x256xf32>
    %10 = vector.shape_cast %9 : vector<8x256xf32> to vector<1x2048xf32>
    %11 = tpu.concatenate %8, %10 in 0 : vector<1x2048xf32>, vector<1x2048xf32> -> vector<2x2048xf32>
    %c0_4 = arith.constant 0 : index
    %c0_5 = arith.constant 0 : index
    %12 = vector.load %arg3[%c0_4, %c0_5] : memref<10x2048xf32, #tpu.memory_space<vmem>>, vector<10x2048xf32>
    %cst_6 = arith.constant dense<0.000000e+00> : vector<10x2xf32>
    %13 = tpu.matmul %12, %11, %cst_6 {dimension_numbers = #tpu.dot_dimension_numbers<[1], [1], [0], [0], [0, 0, 1, 0], [], []>} : vector<10x2048xf32>, vector<2x2048xf32>, vector<10x2xf32> -> vector<10x2xf32>
    %14 = vector.broadcast %2 : vector<10x1xf32> to vector<10x2xf32>
    %15 = arith.addf %13, %14 : vector<10x2xf32>
    %c0_7 = arith.constant 0 : index
    %c0_8 = arith.constant 0 : index
    %16 = vector.load %arg4[%c0_7, %c0_8] : memref<10x2xf32, #tpu.memory_space<vmem>>, vector<10x2xf32>
    tpu.vector_store %arg4[%c0_7, %c0_8], %15 {strides = array<i32>} : memref<10x2xf32, #tpu.memory_space<vmem>>, vector<10x2xf32>,
    return
  }
  func.func @transform_0(%arg0: i32) -> (i32, i32) {
    %c0_i32 = arith.constant 0 : i32
    %c0_i32_0 = arith.constant 0 : i32
    %c0_i32_1 = arith.constant 0 : i32
    return %c0_i32, %c0_i32_0 : i32, i32
  }
  func.func @transform_1(%arg0: i32) -> (i32, i32) {
    %c0_i32 = arith.constant 0 : i32
    %c0_i32_0 = arith.constant 0 : i32
    %c0_i32_1 = arith.constant 0 : i32
    return %c0_i32, %c0_i32_0 : i32, i32
  }
  func.func @transform_2(%arg0: i32) -> (i32, i32) {
    %c0_i32 = arith.constant 0 : i32
    %c0_i32_0 = arith.constant 0 : i32
    %c0_i32_1 = arith.constant 0 : i32
    return %c0_i32, %c0_i32_0 : i32, i32
  }
  func.func @transform_3(%arg0: i32) -> (i32, i32) {
    %c0_i32 = arith.constant 0 : i32
    %c0_i32_0 = arith.constant 0 : i32
    %c0_i32_1 = arith.constant 0 : i32
    return %c0_i32, %c0_i32_0 : i32, i32
  }
}

</mosaic_0001>

<llo_original>
// kernel: _forward_impl.1
$region0: #{_forward_impl.1}
  #allocation0 [shape = 'u32[]', space=smem, size = 0x4, offset = 0x4, fixed_abs, tag = 'smem constant byte address 0x4 - core index']
  #allocation1 [shape = 'u32[144,128]{1,0:T(1,128)}', space=vmem, size = 0x12000, scoped, tag = 'internal scratch']
  %s0 = inlined_call_operand.vmem [shape: f32[37,512], index: 0, kind: input, shape index: {}]
  %s1 = inlined_call_operand.vmem [shape: f32[16,128], index: 1, kind: input, shape index: {}]
  %s2 = inlined_call_operand.vmem [shape: f32[10,2048], index: 2, kind: input, shape index: {}]
  %s3 = inlined_call_operand.vmem [shape: f32[10,2], index: 3, kind: output, shape index: {}]
  %s4 = sld [smem:[#allocation0]]
  $region22: #{_forward_impl.1} parent=0
    _
  %s6 = ssub.s32 1, %s4
  %s7 = scalar_select 0, %s6, %s4
  // Predicated region
  $region2: #{_forward_impl.1} parent=0 // pred_check
    _
  $region3: #{_forward_impl.1} parent=0 // pred_check_branch
    %9 = sbr.rel (0) target = $region5
  $region4: #{_forward_impl.1} parent=0 // pred_region
    _
  $region5: #{_forward_impl.1} parent=0 // pred_fallthru
    _
  // Predicated region
  $region6: #{_forward_impl.1} parent=0 // pred_check
    _
  $region7: #{_forward_impl.1} parent=0 // pred_check_branch
    %11 = sbr.rel (0) target = $region9
  $region8: #{_forward_impl.1} parent=0 // pred_region
    _
  $region9: #{_forward_impl.1} parent=0 // pred_fallthru
    _
  // Predicated region
  $region10: #{_forward_impl.1} parent=0 // pred_check
    _
  $region11: #{_forward_impl.1} parent=0 // pred_check_branch
    %13 = sbr.rel (0) target = $region13
  $region12: #{_forward_impl.1} parent=0 // pred_region
    _
  $region13: #{_forward_impl.1} parent=0 // pred_fallthru
    _
  %v14 = vld [vmem:[%s1] sm:$0xff]
  %v15 = vld [vmem:[%s1 + $0x8] sm:$0xff]
  %v16 = vld [vmem:[%s0] sm:$0xff]
  %v17 = vld [vmem:[%s0 + $0x8] sm:$0xff]
  %v18 = vld [vmem:[%s0 + $0x10] sm:$0xff]
  %v19 = vld [vmem:[%s0 + $0x18] sm:$0xff]
  %v20 = vld [vmem:[%s0 + $0x20] sm:$0xff]
  %v21 = vld [vmem:[%s0 + $0x28] sm:$0xff]
  %v22 = vld [vmem:[%s0 + $0x30] sm:$0xff]
  %v23 = vld [vmem:[%s0 + $0x38] sm:$0xff]
  %v24 = vld [vmem:[%s0 + $0x40] sm:$0xff]
  %v25 = vld [vmem:[%s0 + $0x48] sm:$0xff]
  %v26 = vld [vmem:[%s0 + $0x50] sm:$0xff]
  %v27 = vld [vmem:[%s0 + $0x58] sm:$0xff]
  %v28 = vld [vmem:[%s0 + $0x60] sm:$0xff]
  %v29 = vld [vmem:[%s0 + $0x68] sm:$0xff]
  %v30 = vld [vmem:[%s0 + $0x70] sm:$0xff]
  %v31 = vld [vmem:[%s0 + $0x78] sm:$0xff]
  %v32 = vld [vmem:[%s0 + $0x80] sm:$0x1f]
  %v33 = vld [vmem:[%s0 + $0x88] sm:$0x1f]
  %v34 = vld [vmem:[%s0 + $0x90] sm:$0x1f]
  %v35 = vld [vmem:[%s0 + $0x98] sm:$0x1f]
  %vm36 = vcmask 302080
  %v38 = vsel %vm36, %v14, 0
  %vm40 = vcmask 1044480
  %v42 = vsel %vm40, %v32, 0
  %v45 = vsel %vm40, %v33, 0
  %v48 = vsel %vm40, %v34, 0
  %v51 = vsel %vm40, %v35, 0
  %53 = vmatprep.subr.mxu0 0.0
  %54 = vmatpush1.msra.mxu0 0.0
  %55 = vmatprep.subr.mxu0 0.0
  %56 = vmatpush1.msra.mxu0 0.0
  %57 = vmatprep.subr.mxu0 0.0
  %58 = vmatpush1.msra.mxu0 0.0
  %59 = vmatprep.subr.mxu0 0.0
  %60 = vmatpush1.msra.mxu0 0.0
  %61 = vmatprep.subr.mxu0 0.0
  %62 = vmatpush1.msra.mxu0 0.0
  %63 = vmatprep.subr.mxu0 0.0
  %64 = vmatpush1.msra.mxu0 0.0
  %65 = vmatprep.subr.mxu0 0.0
  %66 = vmatpush1.msra.mxu0 0.0
  %67 = vmatprep.subr.mxu0 0.0
  %68 = vmatpush1.msra.mxu0 0.0
  %69 = vmatprep.subr.mxu0 0.0
  %70 = vmatpush1.msra.mxu0 0.0
  %71 = vmatprep.subr.mxu0 0.0
  %72 = vmatpush1.msra.mxu0 0.0
  %73 = vmatprep.subr.mxu0 0.0
  %74 = vmatpush1.msra.mxu0 0.0
  %75 = vmatprep.subr.mxu0 %v45
  %76 = vmatpush1.msra.mxu0 %v42
  %77 = vmatprep.subr.mxu0 %v29
  %78 = vmatpush1.msra.mxu0 %v28
  %79 = vmatprep.subr.mxu0 %v25
  %80 = vmatpush1.msra.mxu0 %v24
  %81 = vmatprep.subr.mxu0 %v21
  %82 = vmatpush1.msra.mxu0 %v20
  %83 = vmatprep.subr.mxu0 %v17
  %84 = vmatpush1.msra.mxu0 %v16
  %85 = vmatprep.subr.mxu0 0.0
  %86 = vmatpush2.msra.mxu0 0.0
  %87 = vmatprep.subr.mxu0 0.0
  %88 = vmatpush2.msra.mxu0 0.0
  %89 = vmatprep.subr.mxu0 0.0
  %90 = vmatpush2.msra.mxu0 0.0
  %91 = vmatprep.subr.mxu0 0.0
  %92 = vmatpush2.msra.mxu0 0.0
  %93 = vmatprep.subr.mxu0 0.0
  %94 = vmatpush2.msra.mxu0 0.0
  %95 = vmatprep.subr.mxu0 0.0
  %96 = vmatpush2.msra.mxu0 0.0
  %97 = vmatprep.subr.mxu0 0.0
  %98 = vmatpush2.msra.mxu0 0.0
  %99 = vmatprep.subr.mxu0 0.0
  %100 = vmatpush2.msra.mxu0 0.0
  %101 = vmatprep.subr.mxu0 0.0
  %102 = vmatpush2.msra.mxu0 0.0
  %103 = vmatprep.subr.mxu0 0.0
  %104 = vmatpush2.msra.mxu0 0.0
  %105 = vmatprep.subr.mxu0 0.0
  %106 = vmatpush2.msra.mxu0 0.0
  %107 = vmatprep.subr.mxu0 0.0
  %108 = vmatpush2.msra.mxu0 0.0
  %109 = vmatprep.subr.mxu0 0.0
  %110 = vmatpush2.msra.mxu0 0.0
  %111 = vmatprep.subr.mxu0 0.0
  %112 = vmatpush2.msra.mxu0 0.0
  %113 = vmatprep.subr.mxu0 0.0
  %114 = vmatpush2.msra.mxu0 0.0
  %115 = vmatprep.subr.mxu0 0.0
  %116 = vmatpush2.msra.mxu0 0.0
  %117 = vmatprep.mubr.f32.mxu0 0.0
  %118 = vmatmul.mubr.f32.gmra.mxu0 %v38
  %v119 = vpop.f32.mrf.mxu0
  %v120 = vadd.f32 0.0, %v119
  %v121 = vpop.f32.mrf.mxu0
  %v122 = vadd.f32 0.0, %v121
  %123 = vdwg.mxu0
  %124 = vmatprep.subr.mxu0 0.0
  %125 = vmatpush1.msra.mxu0 0.0
  %126 = vmatprep.subr.mxu0 0.0
  %127 = vmatpush1.msra.mxu0 0.0
  %128 = vmatprep.subr.mxu0 0.0
  %129 = vmatpush1.msra.mxu0 0.0
  %130 = vmatprep.subr.mxu0 0.0
  %131 = vmatpush1.msra.mxu0 0.0
  %132 = vmatprep.subr.mxu0 0.0
  %133 = vmatpush1.msra.mxu0 0.0
  %134 = vmatprep.subr.mxu0 0.0
  %135 = vmatpush1.msra.mxu0 0.0
  %136 = vmatprep.subr.mxu0 0.0
  %137 = vmatpush1.msra.mxu0 0.0
  %138 = vmatprep.subr.mxu0 0.0
  %139 = vmatpush1.msra.mxu0 0.0
  %140 = vmatprep.subr.mxu0 0.0
  %141 = vmatpush1.msra.mxu0 0.0
  %142 = vmatprep.subr.mxu0 0.0
  %143 = vmatpush1.msra.mxu0 0.0
  %144 = vmatprep.subr.mxu0 0.0
  %145 = vmatpush1.msra.mxu0 0.0
  %146 = vmatprep.subr.mxu0 %v51
  %147 = vmatpush1.msra.mxu0 %v48
  %148 = vmatprep.subr.mxu0 %v31
  %149 = vmatpush1.msra.mxu0 %v30
  %150 = vmatprep.subr.mxu0 %v27
  %151 = vmatpush1.msra.mxu0 %v26
  %152 = vmatprep.subr.mxu0 %v23
  %153 = vmatpush1.msra.mxu0 %v22
  %154 = vmatprep.subr.mxu0 %v19
  %155 = vmatpush1.msra.mxu0 %v18
  %156 = vmatprep.subr.mxu0 0.0
  %157 = vmatpush2.msra.mxu0 0.0
  %158 = vmatprep.subr.mxu0 0.0
  %159 = vmatpush2.msra.mxu0 0.0
  %160 = vmatprep.subr.mxu0 0.0
  %161 = vmatpush2.msra.mxu0 0.0
  %162 = vmatprep.subr.mxu0 0.0
  %163 = vmatpush2.msra.mxu0 0.0
  %164 = vmatprep.subr.mxu0 0.0
  %165 = vmatpush2.msra.mxu0 0.0
  %166 = vmatprep.subr.mxu0 0.0
  %167 = vmatpush2.msra.mxu0 0.0
  %168 = vmatprep.subr.mxu0 0.0
  %169 = vmatpush2.msra.mxu0 0.0
  %170 = vmatprep.subr.mxu0 0.0
  %171 = vmatpush2.msra.mxu0 0.0
  %172 = vmatprep.subr.mxu0 0.0
  %173 = vmatpush2.msra.mxu0 0.0
  %174 = vmatprep.subr.mxu0 0.0
  %175 = vmatpush2.msra.mxu0 0.0
  %176 = vmatprep.subr.mxu0 0.0
  %177 = vmatpush2.msra.mxu0 0.0
  %178 = vmatprep.subr.mxu0 0.0
  %179 = vmatpush2.msra.mxu0 0.0
  %180 = vmatprep.subr.mxu0 0.0
  %181 = vmatpush2.msra.mxu0 0.0
  %182 = vmatprep.subr.mxu0 0.0
  %183 = vmatpush2.msra.mxu0 0.0
  %184 = vmatprep.subr.mxu0 0.0
  %185 = vmatpush2.msra.mxu0 0.0
  %186 = vmatprep.subr.mxu0 0.0
  %187 = vmatpush2.msra.mxu0 0.0
  %188 = vmatprep.mubr.f32.mxu0 0.0
  %189 = vmatmul.mubr.f32.gmra.mxu0 %v38
  %v190 = vpop.f32.mrf.mxu0
  %v191 = vadd.f32 0.0, %v190
  %v192 = vpop.f32.mrf.mxu0
  %v193 = vadd.f32 0.0, %v192
  %194 = vdwg.mxu0
  %v195 = vmax.f32 %v120, 0.0
  %v196 = vmax.f32 %v122, 0.0
  %v197 = vmax.f32 %v191, 0.0
  %v198 = vmax.f32 %v193, 0.0
  %v201 = vcombine.low %v195, %v196
  %v202 = vcombine.high %v195, %v196
  %v206 = vunpack.c.l.s4 1935823168
  %v207 = vunpack.c.0.s8 %v206
  %v208 = vlaneseq
  %v209 = vshrl.u32 %v208, 7
  %v210 = vsub.s32 %v207, %v209
  %v211 = vrot.slane %v201, %v210
  %v213 = vunpack.c.l.s4 1935823168
  %v214 = vunpack.c.0.s8 %v213
  %v215 = vlaneseq
  %v216 = vshrl.u32 %v215, 7
  %v217 = vsub.s32 %v214, %v216
  %v218 = vrot.slane %v202, %v217
  %v221 = vcombine.low %v197, %v198
  %v222 = vcombine.high %v197, %v198
  %v226 = vunpack.c.l.s4 1935823168
  %v227 = vunpack.c.0.s8 %v226
  %v228 = vlaneseq
  %v229 = vshrl.u32 %v228, 7
  %v230 = vsub.s32 %v227, %v229
  %v231 = vrot.slane %v221, %v230
  %v233 = vunpack.c.l.s4 1935823168
  %v234 = vunpack.c.0.s8 %v233
  %v235 = vlaneseq
  %v236 = vshrl.u32 %v235, 7
  %v237 = vsub.s32 %v234, %v236
  %v238 = vrot.slane %v222, %v237
  %v241 = vlaneseq
  %v242 = vshrl.u32 %v241, 7
  %v243 = vsub.s32 0, %v242
  %v244 = vrot.slane %v211, %v243
  %v245 = vlaneseq
  %v246 = vshrl.u32 %v245, 7
  %v247 = vsub.s32 1, %v246
  %v248 = vrot.slane %v211, %v247
  %v249 = vlaneseq
  %v250 = vshrl.u32 %v249, 7
  %v251 = vsub.s32 2, %v250
  %v252 = vrot.slane %v211, %v251
  %v253 = vlaneseq
  %v254 = vshrl.u32 %v253, 7
  %v255 = vsub.s32 3, %v254
  %v256 = vrot.slane %v211, %v255
  %v257 = vlaneseq
  %v258 = vshrl.u32 %v257, 7
  %v259 = vsub.s32 4, %v258
  %v260 = vrot.slane %v211, %v259
  %v261 = vlaneseq
  %v262 = vshrl.u32 %v261, 7
  %v263 = vsub.s32 5, %v262
  %v264 = vrot.slane %v211, %v263
  %v265 = vlaneseq
  %v266 = vshrl.u32 %v265, 7
  %v267 = vsub.s32 6, %v266
  %v268 = vrot.slane %v211, %v267
  %v269 = vlaneseq
  %v270 = vshrl.u32 %v269, 7
  %v271 = vsub.s32 7, %v270
  %v272 = vrot.slane %v211, %v271
  %v273 = vlaneseq
  %v274 = vshrl.u32 %v273, 7
  %v275 = vsub.s32 0, %v274
  %v276 = vrot.slane %v218, %v275
  %v277 = vlaneseq
  %v278 = vshrl.u32 %v277, 7
  %v279 = vsub.s32 1, %v278
  %v280 = vrot.slane %v218, %v279
  %v281 = vlaneseq
  %v282 = vshrl.u32 %v281, 7
  %v283 = vsub.s32 2, %v282
  %v284 = vrot.slane %v218, %v283
  %v285 = vlaneseq
  %v286 = vshrl.u32 %v285, 7
  %v287 = vsub.s32 3, %v286
  %v288 = vrot.slane %v218, %v287
  %v289 = vlaneseq
  %v290 = vshrl.u32 %v289, 7
  %v291 = vsub.s32 4, %v290
  %v292 = vrot.slane %v218, %v291
  %v293 = vlaneseq
  %v294 = vshrl.u32 %v293, 7
  %v295 = vsub.s32 5, %v294
  %v296 = vrot.slane %v218, %v295
  %v297 = vlaneseq
  %v298 = vshrl.u32 %v297, 7
  %v299 = vsub.s32 6, %v298
  %v300 = vrot.slane %v218, %v299
  %v301 = vlaneseq
  %v302 = vshrl.u32 %v301, 7
  %v303 = vsub.s32 7, %v302
  %v304 = vrot.slane %v218, %v303
  %v323 = vlaneseq
  %v324 = vshrl.u32 %v323, 7
  %v325 = vsub.s32 0, %v324
  %v326 = vrot.slane %v231, %v325
  %v327 = vlaneseq
  %v328 = vshrl.u32 %v327, 7
  %v329 = vsub.s32 1, %v328
  %v330 = vrot.slane %v231, %v329
  %v331 = vlaneseq
  %v332 = vshrl.u32 %v331, 7
  %v333 = vsub.s32 2, %v332
  %v334 = vrot.slane %v231, %v333
  %v335 = vlaneseq
  %v336 = vshrl.u32 %v335, 7
  %v337 = vsub.s32 3, %v336
  %v338 = vrot.slane %v231, %v337
  %v339 = vlaneseq
  %v340 = vshrl.u32 %v339, 7
  %v341 = vsub.s32 4, %v340
  %v342 = vrot.slane %v231, %v341
  %v343 = vlaneseq
  %v344 = vshrl.u32 %v343, 7
  %v345 = vsub.s32 5, %v344
  %v346 = vrot.slane %v231, %v345
  %v347 = vlaneseq
  %v348 = vshrl.u32 %v347, 7
  %v349 = vsub.s32 6, %v348
  %v350 = vrot.slane %v231, %v349
  %v351 = vlaneseq
  %v352 = vshrl.u32 %v351, 7
  %v353 = vsub.s32 7, %v352
  %v354 = vrot.slane %v231, %v353
  %v355 = vlaneseq
  %v356 = vshrl.u32 %v355, 7
  %v357 = vsub.s32 0, %v356
  %v358 = vrot.slane %v238, %v357
  %v359 = vlaneseq
  %v360 = vshrl.u32 %v359, 7
  %v361 = vsub.s32 1, %v360
  %v362 = vrot.slane %v238, %v361
  %v363 = vlaneseq
  %v364 = vshrl.u32 %v363, 7
  %v365 = vsub.s32 2, %v364
  %v366 = vrot.slane %v238, %v365
  %v367 = vlaneseq
  %v368 = vshrl.u32 %v367, 7
  %v369 = vsub.s32 3, %v368
  %v370 = vrot.slane %v238, %v369
  %v371 = vlaneseq
  %v372 = vshrl.u32 %v371, 7
  %v373 = vsub.s32 4, %v372
  %v374 = vrot.slane %v238, %v373
  %v375 = vlaneseq
  %v376 = vshrl.u32 %v375, 7
  %v377 = vsub.s32 5, %v376
  %v378 = vrot.slane %v238, %v377
  %v379 = vlaneseq
  %v380 = vshrl.u32 %v379, 7
  %v381 = vsub.s32 6, %v380
  %v382 = vrot.slane %v238, %v381
  %v383 = vlaneseq
  %v384 = vshrl.u32 %v383, 7
  %v385 = vsub.s32 7, %v384
  %v386 = vrot.slane %v238, %v385
  %vm403 = vcmask 1040384
  %v404 = vsel %vm403, %v244, %v326
  %v405 = vsel %vm403, %v248, %v330
  %v406 = vsel %vm403, %v252, %v334
  %v407 = vsel %vm403, %v256, %v338
  %v408 = vsel %vm403, %v260, %v342
  %v409 = vsel %vm403, %v264, %v346
  %v410 = vsel %vm403, %v268, %v350
  %v411 = vsel %vm403, %v272, %v354
  %v412 = vsel %vm403, %v276, %v358
  %v413 = vsel %vm403, %v280, %v362
  %v414 = vsel %vm403, %v284, %v366
  %v415 = vsel %vm403, %v288, %v370
  %v416 = vsel %vm403, %v292, %v374
  %v417 = vsel %vm403, %v296, %v378
  %v418 = vsel %vm403, %v300, %v382
  %v419 = vsel %vm403, %v304, %v386
  %v420 = vld [vmem:[%s2] sm:$0xff]
  %v421 = vld [vmem:[%s2 + $0x8] sm:$0xff]
  %v422 = vld [vmem:[%s2 + $0x10] sm:$0xff]
  %v423 = vld [vmem:[%s2 + $0x18] sm:$0xff]
  %v424 = vld [vmem:[%s2 + $0x20] sm:$0xff]
  %v425 = vld [vmem:[%s2 + $0x28] sm:$0xff]
  %v426 = vld [vmem:[%s2 + $0x30] sm:$0xff]
  %v427 = vld [vmem:[%s2 + $0x38] sm:$0xff]
  %v428 = vld [vmem:[%s2 + $0x40] sm:$0xff]
  %v429 = vld [vmem:[%s2 + $0x48] sm:$0xff]
  %v430 = vld [vmem:[%s2 + $0x50] sm:$0xff]
  %v431 = vld [vmem:[%s2 + $0x58] sm:$0xff]
  %v432 = vld [vmem:[%s2 + $0x60] sm:$0xff]
  %v433 = vld [vmem:[%s2 + $0x68] sm:$0xff]
  %v434 = vld [vmem:[%s2 + $0x70] sm:$0xff]
  %v435 = vld [vmem:[%s2 + $0x78] sm:$0xff]
  %v436 = vld [vmem:[%s2 + $0x80] sm:$0x3]
  %v437 = vld [vmem:[%s2 + $0x88] sm:$0x3]
  %v438 = vld [vmem:[%s2 + $0x90] sm:$0x3]
  %v439 = vld [vmem:[%s2 + $0x98] sm:$0x3]
  %v440 = vld [vmem:[%s2 + $0xa0] sm:$0x3]
  %v441 = vld [vmem:[%s2 + $0xa8] sm:$0x3]
  %v442 = vld [vmem:[%s2 + $0xb0] sm:$0x3]
  %v443 = vld [vmem:[%s2 + $0xb8] sm:$0x3]
  %v444 = vld [vmem:[%s2 + $0xc0] sm:$0x3]
  %v445 = vld [vmem:[%s2 + $0xc8] sm:$0x3]
  %v446 = vld [vmem:[%s2 + $0xd0] sm:$0x3]
  %v447 = vld [vmem:[%s2 + $0xd8] sm:$0x3]
  %v448 = vld [vmem:[%s2 + $0xe0] sm:$0x3]
  %v449 = vld [vmem:[%s2 + $0xe8] sm:$0x3]
  %v450 = vld [vmem:[%s2 + $0xf0] sm:$0x3]
  %v451 = vld [vmem:[%s2 + $0xf8] sm:$0x3]
  %452 = vset.pattern.permute.xlu0 64
  %453 = vperm.xlu0 %452, %v14
  %v454 = vpop.permute.xlu0 %453
  %457 = vset.pattern.permute.xlu0 64
  %458 = vperm.xlu0 %457, %v15
  %v459 = vpop.permute.xlu0 %458
  %461 = vmatprep.subr.mxu0 0.0
  %462 = vmatpush1.xpose.msra.mxu0 0.0
  %463 = vmatprep.subr.mxu0 0.0
  %464 = vmatpush1.xpose.msra.mxu0 0.0
  %465 = vmatprep.subr.mxu0 0.0
  %466 = vmatpush1.xpose.msra.mxu0 0.0
  %467 = vmatprep.subr.mxu0 0.0
  %468 = vmatpush1.xpose.msra.mxu0 0.0
  %469 = vmatprep.subr.mxu0 0.0
  %470 = vmatpush1.xpose.msra.mxu0 0.0
  %471 = vmatprep.subr.mxu0 0.0
  %472 = vmatpush1.xpose.msra.mxu0 0.0
  %473 = vmatprep.subr.mxu0 0.0
  %474 = vmatpush1.xpose.msra.mxu0 0.0
  %475 = vmatprep.subr.mxu0 0.0
  %476 = vmatpush1.xpose.msra.mxu0 0.0
  %477 = vmatprep.subr.mxu0 0.0
  %478 = vmatpush1.xpose.msra.mxu0 0.0
  %479 = vmatprep.subr.mxu0 0.0
  %480 = vmatpush1.xpose.msra.mxu0 0.0
  %481 = vmatprep.subr.mxu0 0.0
  %482 = vmatpush1.xpose.msra.mxu0 0.0
  %483 = vmatprep.subr.mxu0 0.0
  %484 = vmatpush1.xpose.msra.mxu0 0.0
  %485 = vmatprep.subr.mxu0 0.0
  %486 = vmatpush1.xpose.msra.mxu0 0.0
  %487 = vmatprep.subr.mxu0 0.0
  %488 = vmatpush1.xpose.msra.mxu0 0.0
  %489 = vmatprep.subr.mxu0 0.0
  %490 = vmatpush1.xpose.msra.mxu0 0.0
  %491 = vmatprep.subr.mxu0 %v405
  %492 = vmatpush1.xpose.msra.mxu0 %v404
  %493 = vmatprep.subr.mxu0 0.0
  %494 = vmatpush2.xpose.msra.mxu0 0.0
  %495 = vmatprep.subr.mxu0 0.0
  %496 = vmatpush2.xpose.msra.mxu0 0.0
  %497 = vmatprep.subr.mxu0 0.0
  %498 = vmatpush2.xpose.msra.mxu0 0.0
  %499 = vmatprep.subr.mxu0 0.0
  %500 = vmatpush2.xpose.msra.mxu0 0.0
  %501 = vmatprep.subr.mxu0 0.0
  %502 = vmatpush2.xpose.msra.mxu0 0.0
  %503 = vmatprep.subr.mxu0 0.0
  %504 = vmatpush2.xpose.msra.mxu0 0.0
  %505 = vmatprep.subr.mxu0 0.0
  %506 = vmatpush2.xpose.msra.mxu0 0.0
  %507 = vmatprep.subr.mxu0 0.0
  %508 = vmatpush2.xpose.msra.mxu0 0.0
  %509 = vmatprep.subr.mxu0 0.0
  %510 = vmatpush2.xpose.msra.mxu0 0.0
  %511 = vmatprep.subr.mxu0 0.0
  %512 = vmatpush2.xpose.msra.mxu0 0.0
  %513 = vmatprep.subr.mxu0 0.0
  %514 = vmatpush2.xpose.msra.mxu0 0.0
  %515 = vmatprep.subr.mxu0 0.0
  %516 = vmatpush2.xpose.msra.mxu0 0.0
  %517 = vmatprep.subr.mxu0 0.0
  %518 = vmatpush2.xpose.msra.mxu0 0.0
  %519 = vmatprep.subr.mxu0 0.0
  %520 = vmatpush2.xpose.msra.mxu0 0.0
  %521 = vmatprep.subr.mxu0 0.0
  %522 = vmatpush2.xpose.msra.mxu0 0.0
  %523 = vmatprep.subr.mxu0 0.0
  %524 = vmatpush2.xpose.msra.mxu0 0.0
  %525 = vmatprep.mubr.f32.mxu0 %v421
  %526 = vmatmul.mubr.f32.gmra.mxu0 %v420
  %v527 = vpop.f32.mrf.mxu0
  %v528 = vadd.f32 %v454, %v527
  %v529 = vpop.f32.mrf.mxu0
  %530 = vmatprep.mubr.f32.mxu0 %v437
  %531 = vmatmul.mubr.f32.gmra.mxu0 %v436
  %v532 = vpop.f32.mrf.mxu0
  %v533 = vadd.f32 %v459, %v532
  %v534 = vpop.f32.mrf.mxu0
  %535 = vdwg.mxu0
  %536 = vmatprep.subr.mxu0 0.0
  %537 = vmatpush1.xpose.msra.mxu0 0.0
  %538 = vmatprep.subr.mxu0 0.0
  %539 = vmatpush1.xpose.msra.mxu0 0.0
  %540 = vmatprep.subr.mxu0 0.0
  %541 = vmatpush1.xpose.msra.mxu0 0.0
  %542 = vmatprep.subr.mxu0 0.0
  %543 = vmatpush1.xpose.msra.mxu0 0.0
  %544 = vmatprep.subr.mxu0 0.0
  %545 = vmatpush1.xpose.msra.mxu0 0.0
  %546 = vmatprep.subr.mxu0 0.0
  %547 = vmatpush1.xpose.msra.mxu0 0.0
  %548 = vmatprep.subr.mxu0 0.0
  %549 = vmatpush1.xpose.msra.mxu0 0.0
  %550 = vmatprep.subr.mxu0 0.0
  %551 = vmatpush1.xpose.msra.mxu0 0.0
  %552 = vmatprep.subr.mxu0 0.0
  %553 = vmatpush1.xpose.msra.mxu0 0.0
  %554 = vmatprep.subr.mxu0 0.0
  %555 = vmatpush1.xpose.msra.mxu0 0.0
  %556 = vmatprep.subr.mxu0 0.0
  %557 = vmatpush1.xpose.msra.mxu0 0.0
  %558 = vmatprep.subr.mxu0 0.0
  %559 = vmatpush1.xpose.msra.mxu0 0.0
  %560 = vmatprep.subr.mxu0 0.0
  %561 = vmatpush1.xpose.msra.mxu0 0.0
  %562 = vmatprep.subr.mxu0 0.0
  %563 = vmatpush1.xpose.msra.mxu0 0.0
  %564 = vmatprep.subr.mxu0 0.0
  %565 = vmatpush1.xpose.msra.mxu0 0.0
  %566 = vmatprep.subr.mxu0 %v407
  %567 = vmatpush1.xpose.msra.mxu0 %v406
  %568 = vmatprep.subr.mxu0 0.0
  %569 = vmatpush2.xpose.msra.mxu0 0.0
  %570 = vmatprep.subr.mxu0 0.0
  %571 = vmatpush2.xpose.msra.mxu0 0.0
  %572 = vmatprep.subr.mxu0 0.0
  %573 = vmatpush2.xpose.msra.mxu0 0.0
  %574 = vmatprep.subr.mxu0 0.0
  %575 = vmatpush2.xpose.msra.mxu0 0.0
  %576 = vmatprep.subr.mxu0 0.0
  %577 = vmatpush2.xpose.msra.mxu0 0.0
  %578 = vmatprep.subr.mxu0 0.0
  %579 = vmatpush2.xpose.msra.mxu0 0.0
  %580 = vmatprep.subr.mxu0 0.0
  %581 = vmatpush2.xpose.msra.mxu0 0.0
  %582 = vmatprep.subr.mxu0 0.0
  %583 = vmatpush2.xpose.msra.mxu0 0.0
  %584 = vmatprep.subr.mxu0 0.0
  %585 = vmatpush2.xpose.msra.mxu0 0.0
  %586 = vmatprep.subr.mxu0 0.0
  %587 = vmatpush2.xpose.msra.mxu0 0.0
  %588 = vmatprep.subr.mxu0 0.0
  %589 = vmatpush2.xpose.msra.mxu0 0.0
  %590 = vmatprep.subr.mxu0 0.0
  %591 = vmatpush2.xpose.msra.mxu0 0.0
  %592 = vmatprep.subr.mxu0 0.0
  %593 = vmatpush2.xpose.msra.mxu0 0.0
  %594 = vmatprep.subr.mxu0 0.0
  %595 = vmatpush2.xpose.msra.mxu0 0.0
  %596 = vmatprep.subr.mxu0 0.0
  %597 = vmatpush2.xpose.msra.mxu0 0.0
  %598 = vmatprep.subr.mxu0 0.0
  %599 = vmatpush2.xpose.msra.mxu0 0.0
  %600 = vmatprep.mubr.f32.mxu0 %v423
  %601 = vmatmul.mubr.f32.gmra.mxu0 %v422
  %v602 = vpop.f32.mrf.mxu0
  %v603 = vadd.f32 %v528, %v602
  %v604 = vpop.f32.mrf.mxu0
  %605 = vmatprep.mubr.f32.mxu0 %v439
  %606 = vmatmul.mubr.f32.gmra.mxu0 %v438
  %v607 = vpop.f32.mrf.mxu0
  %v608 = vadd.f32 %v533, %v607
  %v609 = vpop.f32.mrf.mxu0
  %610 = vdwg.mxu0
  %611 = vmatprep.subr.mxu0 0.0
  %612 = vmatpush1.xpose.msra.mxu0 0.0
  %613 = vmatprep.subr.mxu0 0.0
  %614 = vmatpush1.xpose.msra.mxu0 0.0
  %615 = vmatprep.subr.mxu0 0.0
  %616 = vmatpush1.xpose.msra.mxu0 0.0
  %617 = vmatprep.subr.mxu0 0.0
  %618 = vmatpush1.xpose.msra.mxu0 0.0
  %619 = vmatprep.subr.mxu0 0.0
  %620 = vmatpush1.xpose.msra.mxu0 0.0
  %621 = vmatprep.subr.mxu0 0.0
  %622 = vmatpush1.xpose.msra.mxu0 0.0
  %623 = vmatprep.subr.mxu0 0.0
  %624 = vmatpush1.xpose.msra.mxu0 0.0
  %625 = vmatprep.subr.mxu0 0.0
  %626 = vmatpush1.xpose.msra.mxu0 0.0
  %627 = vmatprep.subr.mxu0 0.0
  %628 = vmatpush1.xpose.msra.mxu0 0.0
  %629 = vmatprep.subr.mxu0 0.0
  %630 = vmatpush1.xpose.msra.mxu0 0.0
  %631 = vmatprep.subr.mxu0 0.0
  %632 = vmatpush1.xpose.msra.mxu0 0.0
  %633 = vmatprep.subr.mxu0 0.0
  %634 = vmatpush1.xpose.msra.mxu0 0.0
  %635 = vmatprep.subr.mxu0 0.0
  %636 = vmatpush1.xpose.msra.mxu0 0.0
  %637 = vmatprep.subr.mxu0 0.0
  %638 = vmatpush1.xpose.msra.mxu0 0.0
  %639 = vmatprep.subr.mxu0 0.0
  %640 = vmatpush1.xpose.msra.mxu0 0.0
  %641 = vmatprep.subr.mxu0 %v409
  %642 = vmatpush1.xpose.msra.mxu0 %v408
  %643 = vmatprep.subr.mxu0 0.0
  %644 = vmatpush2.xpose.msra.mxu0 0.0
  %645 = vmatprep.subr.mxu0 0.0
  %646 = vmatpush2.xpose.msra.mxu0 0.0
  %647 = vmatprep.subr.mxu0 0.0
  %648 = vmatpush2.xpose.msra.mxu0 0.0
  %649 = vmatprep.subr.mxu0 0.0
  %650 = vmatpush2.xpose.msra.mxu0 0.0
  %651 = vmatprep.subr.mxu0 0.0
  %652 = vmatpush2.xpose.msra.mxu0 0.0
  %653 = vmatprep.subr.mxu0 0.0
  %654 = vmatpush2.xpose.msra.mxu0 0.0
  %655 = vmatprep.subr.mxu0 0.0
  %656 = vmatpush2.xpose.msra.mxu0 0.0
  %657 = vmatprep.subr.mxu0 0.0
  %658 = vmatpush2.xpose.msra.mxu0 0.0
  %659 = vmatprep.subr.mxu0 0.0
  %660 = vmatpush2.xpose.msra.mxu0 0.0
  %661 = vmatprep.subr.mxu0 0.0
  %662 = vmatpush2.xpose.msra.mxu0 0.0
  %663 = vmatprep.subr.mxu0 0.0
  %664 = vmatpush2.xpose.msra.mxu0 0.0
  %665 = vmatprep.subr.mxu0 0.0
  %666 = vmatpush2.xpose.msra.mxu0 0.0
  %667 = vmatprep.subr.mxu0 0.0
  %668 = vmatpush2.xpose.msra.mxu0 0.0
  %669 = vmatprep.subr.mxu0 0.0
  %670 = vmatpush2.xpose.msra.mxu0 0.0
  %671 = vmatprep.subr.mxu0 0.0
  %672 = vmatpush2.xpose.msra.mxu0 0.0
  %673 = vmatprep.subr.mxu0 0.0
  %674 = vmatpush2.xpose.msra.mxu0 0.0
  %675 = vmatprep.mubr.f32.mxu0 %v425
  %676 = vmatmul.mubr.f32.gmra.mxu0 %v424
  %v677 = vpop.f32.mrf.mxu0
  %v678 = vadd.f32 %v603, %v677
  %v679 = vpop.f32.mrf.mxu0
  %680 = vmatprep.mubr.f32.mxu0 %v441
  %681 = vmatmul.mubr.f32.gmra.mxu0 %v440
  %v682 = vpop.f32.mrf.mxu0
  %v683 = vadd.f32 %v608, %v682
  %v684 = vpop.f32.mrf.mxu0
  %685 = vdwg.mxu0
  %686 = vmatprep.subr.mxu0 0.0
  %687 = vmatpush1.xpose.msra.mxu0 0.0
  %688 = vmatprep.subr.mxu0 0.0
  %689 = vmatpush1.xpose.msra.mxu0 0.0
  %690 = vmatprep.subr.mxu0 0.0
  %691 = vmatpush1.xpose.msra.mxu0 0.0
  %692 = vmatprep.subr.mxu0 0.0
  %693 = vmatpush1.xpose.msra.mxu0 0.0
  %694 = vmatprep.subr.mxu0 0.0
  %695 = vmatpush1.xpose.msra.mxu0 0.0
  %696 = vmatprep.subr.mxu0 0.0
  %697 = vmatpush1.xpose.msra.mxu0 0.0
  %698 = vmatprep.subr.mxu0 0.0
  %699 = vmatpush1.xpose.msra.mxu0 0.0
  %700 = vmatprep.subr.mxu0 0.0
  %701 = vmatpush1.xpose.msra.mxu0 0.0
  %702 = vmatprep.subr.mxu0 0.0
  %703 = vmatpush1.xpose.msra.mxu0 0.0
  %704 = vmatprep.subr.mxu0 0.0
  %705 = vmatpush1.xpose.msra.mxu0 0.0
  %706 = vmatprep.subr.mxu0 0.0
  %707 = vmatpush1.xpose.msra.mxu0 0.0
  %708 = vmatprep.subr.mxu0 0.0
  %709 = vmatpush1.xpose.msra.mxu0 0.0
  %710 = vmatprep.subr.mxu0 0.0
  %711 = vmatpush1.xpose.msra.mxu0 0.0
  %712 = vmatprep.subr.mxu0 0.0
  %713 = vmatpush1.xpose.msra.mxu0 0.0
  %714 = vmatprep.subr.mxu0 0.0
  %715 = vmatpush1.xpose.msra.mxu0 0.0
  %716 = vmatprep.subr.mxu0 %v411
  %717 = vmatpush1.xpose.msra.mxu0 %v410
  %718 = vmatprep.subr.mxu0 0.0
  %719 = vmatpush2.xpose.msra.mxu0 0.0
  %720 = vmatprep.subr.mxu0 0.0
  %721 = vmatpush2.xpose.msra.mxu0 0.0
  %722 = vmatprep.subr.mxu0 0.0
  %723 = vmatpush2.xpose.msra.mxu0 0.0
  %724 = vmatprep.subr.mxu0 0.0
  %725 = vmatpush2.xpose.msra.mxu0 0.0
  %726 = vmatprep.subr.mxu0 0.0
  %727 = vmatpush2.xpose.msra.mxu0 0.0
  %728 = vmatprep.subr.mxu0 0.0
  %729 = vmatpush2.xpose.msra.mxu0 0.0
  %730 = vmatprep.subr.mxu0 0.0
  %731 = vmatpush2.xpose.msra.mxu0 0.0
  %732 = vmatprep.subr.mxu0 0.0
  %733 = vmatpush2.xpose.msra.mxu0 0.0
  %734 = vmatprep.subr.mxu0 0.0
  %735 = vmatpush2.xpose.msra.mxu0 0.0
  %736 = vmatprep.subr.mxu0 0.0
  %737 = vmatpush2.xpose.msra.mxu0 0.0
  %738 = vmatprep.subr.mxu0 0.0
  %739 = vmatpush2.xpose.msra.mxu0 0.0
  %740 = vmatprep.subr.mxu0 0.0
  %741 = vmatpush2.xpose.msra.mxu0 0.0
  %742 = vmatprep.subr.mxu0 0.0
  %743 = vmatpush2.xpose.msra.mxu0 0.0
  %744 = vmatprep.subr.mxu0 0.0
  %745 = vmatpush2.xpose.msra.mxu0 0.0
  %746 = vmatprep.subr.mxu0 0.0
  %747 = vmatpush2.xpose.msra.mxu0 0.0
  %748 = vmatprep.subr.mxu0 0.0
  %749 = vmatpush2.xpose.msra.mxu0 0.0
  %750 = vmatprep.mubr.f32.mxu0 %v427
  %751 = vmatmul.mubr.f32.gmra.mxu0 %v426
  %v752 = vpop.f32.mrf.mxu0
  %v753 = vadd.f32 %v678, %v752
  %v754 = vpop.f32.mrf.mxu0
  %755 = vmatprep.mubr.f32.mxu0 %v443
  %756 = vmatmul.mubr.f32.gmra.mxu0 %v442
  %v757 = vpop.f32.mrf.mxu0
  %v758 = vadd.f32 %v683, %v757
  %v759 = vpop.f32.mrf.mxu0
  %760 = vdwg.mxu0
  %761 = vmatprep.subr.mxu0 0.0
  %762 = vmatpush1.xpose.msra.mxu0 0.0
  %763 = vmatprep.subr.mxu0 0.0
  %764 = vmatpush1.xpose.msra.mxu0 0.0
  %765 = vmatprep.subr.mxu0 0.0
  %766 = vmatpush1.xpose.msra.mxu0 0.0
  %767 = vmatprep.subr.mxu0 0.0
  %768 = vmatpush1.xpose.msra.mxu0 0.0
  %769 = vmatprep.subr.mxu0 0.0
  %770 = vmatpush1.xpose.msra.mxu0 0.0
  %771 = vmatprep.subr.mxu0 0.0
  %772 = vmatpush1.xpose.msra.mxu0 0.0
  %773 = vmatprep.subr.mxu0 0.0
  %774 = vmatpush1.xpose.msra.mxu0 0.0
  %775 = vmatprep.subr.mxu0 0.0
  %776 = vmatpush1.xpose.msra.mxu0 0.0
  %777 = vmatprep.subr.mxu0 0.0
  %778 = vmatpush1.xpose.msra.mxu0 0.0
  %779 = vmatprep.subr.mxu0 0.0
  %780 = vmatpush1.xpose.msra.mxu0 0.0
  %781 = vmatprep.subr.mxu0 0.0
  %782 = vmatpush1.xpose.msra.mxu0 0.0
  %783 = vmatprep.subr.mxu0 0.0
  %784 = vmatpush1.xpose.msra.mxu0 0.0
  %785 = vmatprep.subr.mxu0 0.0
  %786 = vmatpush1.xpose.msra.mxu0 0.0
  %787 = vmatprep.subr.mxu0 0.0
  %788 = vmatpush1.xpose.msra.mxu0 0.0
  %789 = vmatprep.subr.mxu0 0.0
  %790 = vmatpush1.xpose.msra.mxu0 0.0
  %791 = vmatprep.subr.mxu0 %v413
  %792 = vmatpush1.xpose.msra.mxu0 %v412
  %793 = vmatprep.subr.mxu0 0.0
  %794 = vmatpush2.xpose.msra.mxu0 0.0
  %795 = vmatprep.subr.mxu0 0.0
  %796 = vmatpush2.xpose.msra.mxu0 0.0
  %797 = vmatprep.subr.mxu0 0.0
  %798 = vmatpush2.xpose.msra.mxu0 0.0
  %799 = vmatprep.subr.mxu0 0.0
  %800 = vmatpush2.xpose.msra.mxu0 0.0
  %801 = vmatprep.subr.mxu0 0.0
  %802 = vmatpush2.xpose.msra.mxu0 0.0
  %803 = vmatprep.subr.mxu0 0.0
  %804 = vmatpush2.xpose.msra.mxu0 0.0
  %805 = vmatprep.subr.mxu0 0.0
  %806 = vmatpush2.xpose.msra.mxu0 0.0
  %807 = vmatprep.subr.mxu0 0.0
  %808 = vmatpush2.xpose.msra.mxu0 0.0
  %809 = vmatprep.subr.mxu0 0.0
  %810 = vmatpush2.xpose.msra.mxu0 0.0
  %811 = vmatprep.subr.mxu0 0.0
  %812 = vmatpush2.xpose.msra.mxu0 0.0
  %813 = vmatprep.subr.mxu0 0.0
  %814 = vmatpush2.xpose.msra.mxu0 0.0
  %815 = vmatprep.subr.mxu0 0.0
  %816 = vmatpush2.xpose.msra.mxu0 0.0
  %817 = vmatprep.subr.mxu0 0.0
  %818 = vmatpush2.xpose.msra.mxu0 0.0
  %819 = vmatprep.subr.mxu0 0.0
  %820 = vmatpush2.xpose.msra.mxu0 0.0
  %821 = vmatprep.subr.mxu0 0.0
  %822 = vmatpush2.xpose.msra.mxu0 0.0
  %823 = vmatprep.subr.mxu0 0.0
  %824 = vmatpush2.xpose.msra.mxu0 0.0
  %825 = vmatprep.mubr.f32.mxu0 %v429
  %826 = vmatmul.mubr.f32.gmra.mxu0 %v428
  %v827 = vpop.f32.mrf.mxu0
  %v828 = vadd.f32 %v753, %v827
  %v829 = vpop.f32.mrf.mxu0
  %830 = vmatprep.mubr.f32.mxu0 %v445
  %831 = vmatmul.mubr.f32.gmra.mxu0 %v444
  %v832 = vpop.f32.mrf.mxu0
  %v833 = vadd.f32 %v758, %v832
  %v834 = vpop.f32.mrf.mxu0
  %835 = vdwg.mxu0
  %836 = vmatprep.subr.mxu0 0.0
  %837 = vmatpush1.xpose.msra.mxu0 0.0
  %838 = vmatprep.subr.mxu0 0.0
  %839 = vmatpush1.xpose.msra.mxu0 0.0
  %840 = vmatprep.subr.mxu0 0.0
  %841 = vmatpush1.xpose.msra.mxu0 0.0
  %842 = vmatprep.subr.mxu0 0.0
  %843 = vmatpush1.xpose.msra.mxu0 0.0
  %844 = vmatprep.subr.mxu0 0.0
  %845 = vmatpush1.xpose.msra.mxu0 0.0
  %846 = vmatprep.subr.mxu0 0.0
  %847 = vmatpush1.xpose.msra.mxu0 0.0
  %848 = vmatprep.subr.mxu0 0.0
  %849 = vmatpush1.xpose.msra.mxu0 0.0
  %850 = vmatprep.subr.mxu0 0.0
  %851 = vmatpush1.xpose.msra.mxu0 0.0
  %852 = vmatprep.subr.mxu0 0.0
  %853 = vmatpush1.xpose.msra.mxu0 0.0
  %854 = vmatprep.subr.mxu0 0.0
  %855 = vmatpush1.xpose.msra.mxu0 0.0
  %856 = vmatprep.subr.mxu0 0.0
  %857 = vmatpush1.xpose.msra.mxu0 0.0
  %858 = vmatprep.subr.mxu0 0.0
  %859 = vmatpush1.xpose.msra.mxu0 0.0
  %860 = vmatprep.subr.mxu0 0.0
  %861 = vmatpush1.xpose.msra.mxu0 0.0
  %862 = vmatprep.subr.mxu0 0.0
  %863 = vmatpush1.xpose.msra.mxu0 0.0
  %864 = vmatprep.subr.mxu0 0.0
  %865 = vmatpush1.xpose.msra.mxu0 0.0
  %866 = vmatprep.subr.mxu0 %v415
  %867 = vmatpush1.xpose.msra.mxu0 %v414
  %868 = vmatprep.subr.mxu0 0.0
  %869 = vmatpush2.xpose.msra.mxu0 0.0
  %870 = vmatprep.subr.mxu0 0.0
  %871 = vmatpush2.xpose.msra.mxu0 0.0
  %872 = vmatprep.subr.mxu0 0.0
  %873 = vmatpush2.xpose.msra.mxu0 0.0
  %874 = vmatprep.subr.mxu0 0.0
  %875 = vmatpush2.xpose.msra.mxu0 0.0
  %876 = vmatprep.subr.mxu0 0.0
  %877 = vmatpush2.xpose.msra.mxu0 0.0
  %878 = vmatprep.subr.mxu0 0.0
  %879 = vmatpush2.xpose.msra.mxu0 0.0
  %880 = vmatprep.subr.mxu0 0.0
  %881 = vmatpush2.xpose.msra.mxu0 0.0
  %882 = vmatprep.subr.mxu0 0.0
  %883 = vmatpush2.xpose.msra.mxu0 0.0
  %884 = vmatprep.subr.mxu0 0.0
  %885 = vmatpush2.xpose.msra.mxu0 0.0
  %886 = vmatprep.subr.mxu0 0.0
  %887 = vmatpush2.xpose.msra.mxu0 0.0
  %888 = vmatprep.subr.mxu0 0.0
  %889 = vmatpush2.xpose.msra.mxu0 0.0
  %890 = vmatprep.subr.mxu0 0.0
  %891 = vmatpush2.xpose.msra.mxu0 0.0
  %892 = vmatprep.subr.mxu0 0.0
  %893 = vmatpush2.xpose.msra.mxu0 0.0
  %894 = vmatprep.subr.mxu0 0.0
  %895 = vmatpush2.xpose.msra.mxu0 0.0
  %896 = vmatprep.subr.mxu0 0.0
  %897 = vmatpush2.xpose.msra.mxu0 0.0
  %898 = vmatprep.subr.mxu0 0.0
  %899 = vmatpush2.xpose.msra.mxu0 0.0
  %900 = vmatprep.mubr.f32.mxu0 %v431
  %901 = vmatmul.mubr.f32.gmra.mxu0 %v430
  %v902 = vpop.f32.mrf.mxu0
  %v903 = vadd.f32 %v828, %v902
  %v904 = vpop.f32.mrf.mxu0
  %905 = vmatprep.mubr.f32.mxu0 %v447
  %906 = vmatmul.mubr.f32.gmra.mxu0 %v446
  %v907 = vpop.f32.mrf.mxu0
  %v908 = vadd.f32 %v833, %v907
  %v909 = vpop.f32.mrf.mxu0
  %910 = vdwg.mxu0
  %911 = vmatprep.subr.mxu0 0.0
  %912 = vmatpush1.xpose.msra.mxu0 0.0
  %913 = vmatprep.subr.mxu0 0.0
  %914 = vmatpush1.xpose.msra.mxu0 0.0
  %915 = vmatprep.subr.mxu0 0.0
  %916 = vmatpush1.xpose.msra.mxu0 0.0
  %917 = vmatprep.subr.mxu0 0.0
  %918 = vmatpush1.xpose.msra.mxu0 0.0
  %919 = vmatprep.subr.mxu0 0.0
  %920 = vmatpush1.xpose.msra.mxu0 0.0
  %921 = vmatprep.subr.mxu0 0.0
  %922 = vmatpush1.xpose.msra.mxu0 0.0
  %923 = vmatprep.subr.mxu0 0.0
  %924 = vmatpush1.xpose.msra.mxu0 0.0
  %925 = vmatprep.subr.mxu0 0.0
  %926 = vmatpush1.xpose.msra.mxu0 0.0
  %927 = vmatprep.subr.mxu0 0.0
  %928 = vmatpush1.xpose.msra.mxu0 0.0
  %929 = vmatprep.subr.mxu0 0.0
  %930 = vmatpush1.xpose.msra.mxu0 0.0
  %931 = vmatprep.subr.mxu0 0.0
  %932 = vmatpush1.xpose.msra.mxu0 0.0
  %933 = vmatprep.subr.mxu0 0.0
  %934 = vmatpush1.xpose.msra.mxu0 0.0
  %935 = vmatprep.subr.mxu0 0.0
  %936 = vmatpush1.xpose.msra.mxu0 0.0
  %937 = vmatprep.subr.mxu0 0.0
  %938 = vmatpush1.xpose.msra.mxu0 0.0
  %939 = vmatprep.subr.mxu0 0.0
  %940 = vmatpush1.xpose.msra.mxu0 0.0
  %941 = vmatprep.subr.mxu0 %v417
  %942 = vmatpush1.xpose.msra.mxu0 %v416
  %943 = vmatprep.subr.mxu0 0.0
  %944 = vmatpush2.xpose.msra.mxu0 0.0
  %945 = vmatprep.subr.mxu0 0.0
  %946 = vmatpush2.xpose.msra.mxu0 0.0
  %947 = vmatprep.subr.mxu0 0.0
  %948 = vmatpush2.xpose.msra.mxu0 0.0
  %949 = vmatprep.subr.mxu0 0.0
  %950 = vmatpush2.xpose.msra.mxu0 0.0
  %951 = vmatprep.subr.mxu0 0.0
  %952 = vmatpush2.xpose.msra.mxu0 0.0
  %953 = vmatprep.subr.mxu0 0.0
  %954 = vmatpush2.xpose.msra.mxu0 0.0
  %955 = vmatprep.subr.mxu0 0.0
  %956 = vmatpush2.xpose.msra.mxu0 0.0
  %957 = vmatprep.subr.mxu0 0.0
  %958 = vmatpush2.xpose.msra.mxu0 0.0
  %959 = vmatprep.subr.mxu0 0.0
  %960 = vmatpush2.xpose.msra.mxu0 0.0
  %961 = vmatprep.subr.mxu0 0.0
  %962 = vmatpush2.xpose.msra.mxu0 0.0
  %963 = vmatprep.subr.mxu0 0.0
  %964 = vmatpush2.xpose.msra.mxu0 0.0
  %965 = vmatprep.subr.mxu0 0.0
  %966 = vmatpush2.xpose.msra.mxu0 0.0
  %967 = vmatprep.subr.mxu0 0.0
  %968 = vmatpush2.xpose.msra.mxu0 0.0
  %969 = vmatprep.subr.mxu0 0.0
  %970 = vmatpush2.xpose.msra.mxu0 0.0
  %971 = vmatprep.subr.mxu0 0.0
  %972 = vmatpush2.xpose.msra.mxu0 0.0
  %973 = vmatprep.subr.mxu0 0.0
  %974 = vmatpush2.xpose.msra.mxu0 0.0
  %975 = vmatprep.mubr.f32.mxu0 %v433
  %976 = vmatmul.mubr.f32.gmra.mxu0 %v432
  %v977 = vpop.f32.mrf.mxu0
  %v978 = vadd.f32 %v903, %v977
  %v979 = vpop.f32.mrf.mxu0
  %980 = vmatprep.mubr.f32.mxu0 %v449
  %981 = vmatmul.mubr.f32.gmra.mxu0 %v448
  %v982 = vpop.f32.mrf.mxu0
  %v983 = vadd.f32 %v908, %v982
  %v984 = vpop.f32.mrf.mxu0
  %985 = vdwg.mxu0
  %986 = vmatprep.subr.mxu0 0.0
  %987 = vmatpush1.xpose.msra.mxu0 0.0
  %988 = vmatprep.subr.mxu0 0.0
  %989 = vmatpush1.xpose.msra.mxu0 0.0
  %990 = vmatprep.subr.mxu0 0.0
  %991 = vmatpush1.xpose.msra.mxu0 0.0
  %992 = vmatprep.subr.mxu0 0.0
  %993 = vmatpush1.xpose.msra.mxu0 0.0
  %994 = vmatprep.subr.mxu0 0.0
  %995 = vmatpush1.xpose.msra.mxu0 0.0
  %996 = vmatprep.subr.mxu0 0.0
  %997 = vmatpush1.xpose.msra.mxu0 0.0
  %998 = vmatprep.subr.mxu0 0.0
  %999 = vmatpush1.xpose.msra.mxu0 0.0
  %1000 = vmatprep.subr.mxu0 0.0
  %1001 = vmatpush1.xpose.msra.mxu0 0.0
  %1002 = vmatprep.subr.mxu0 0.0
  %1003 = vmatpush1.xpose.msra.mxu0 0.0
  %1004 = vmatprep.subr.mxu0 0.0
  %1005 = vmatpush1.xpose.msra.mxu0 0.0
  %1006 = vmatprep.subr.mxu0 0.0
  %1007 = vmatpush1.xpose.msra.mxu0 0.0
  %1008 = vmatprep.subr.mxu0 0.0
  %1009 = vmatpush1.xpose.msra.mxu0 0.0
  %1010 = vmatprep.subr.mxu0 0.0
  %1011 = vmatpush1.xpose.msra.mxu0 0.0
  %1012 = vmatprep.subr.mxu0 0.0
  %1013 = vmatpush1.xpose.msra.mxu0 0.0
  %1014 = vmatprep.subr.mxu0 0.0
  %1015 = vmatpush1.xpose.msra.mxu0 0.0
  %1016 = vmatprep.subr.mxu0 %v419
  %1017 = vmatpush1.xpose.msra.mxu0 %v418
  %1018 = vmatprep.subr.mxu0 0.0
  %1019 = vmatpush2.xpose.msra.mxu0 0.0
  %1020 = vmatprep.subr.mxu0 0.0
  %1021 = vmatpush2.xpose.msra.mxu0 0.0
  %1022 = vmatprep.subr.mxu0 0.0
  %1023 = vmatpush2.xpose.msra.mxu0 0.0
  %1024 = vmatprep.subr.mxu0 0.0
  %1025 = vmatpush2.xpose.msra.mxu0 0.0
  %1026 = vmatprep.subr.mxu0 0.0
  %1027 = vmatpush2.xpose.msra.mxu0 0.0
  %1028 = vmatprep.subr.mxu0 0.0
  %1029 = vmatpush2.xpose.msra.mxu0 0.0
  %1030 = vmatprep.subr.mxu0 0.0
  %1031 = vmatpush2.xpose.msra.mxu0 0.0
  %1032 = vmatprep.subr.mxu0 0.0
  %1033 = vmatpush2.xpose.msra.mxu0 0.0
  %1034 = vmatprep.subr.mxu0 0.0
  %1035 = vmatpush2.xpose.msra.mxu0 0.0
  %1036 = vmatprep.subr.mxu0 0.0
  %1037 = vmatpush2.xpose.msra.mxu0 0.0
  %1038 = vmatprep.subr.mxu0 0.0
  %1039 = vmatpush2.xpose.msra.mxu0 0.0
  %1040 = vmatprep.subr.mxu0 0.0
  %1041 = vmatpush2.xpose.msra.mxu0 0.0
  %1042 = vmatprep.subr.mxu0 0.0
  %1043 = vmatpush2.xpose.msra.mxu0 0.0
  %1044 = vmatprep.subr.mxu0 0.0
  %1045 = vmatpush2.xpose.msra.mxu0 0.0
  %1046 = vmatprep.subr.mxu0 0.0
  %1047 = vmatpush2.xpose.msra.mxu0 0.0
  %1048 = vmatprep.subr.mxu0 0.0
  %1049 = vmatpush2.xpose.msra.mxu0 0.0
  %1050 = vmatprep.mubr.f32.mxu0 %v435
  %1051 = vmatmul.mubr.f32.gmra.mxu0 %v434
  %v1052 = vpop.f32.mrf.mxu0
  %v1053 = vadd.f32 %v978, %v1052
  %v1054 = vpop.f32.mrf.mxu0
  %1055 = vmatprep.mubr.f32.mxu0 %v451
  %1056 = vmatmul.mubr.f32.gmra.mxu0 %v450
  %v1057 = vpop.f32.mrf.mxu0
  %v1058 = vadd.f32 %v983, %v1057
  %v1059 = vpop.f32.mrf.mxu0
  %1060 = vdwg.mxu0
  %vm1061 = vcmask 15360
  %1062 = vst.msk [vmem:[%s3] sm:$0xff] %vm1061, %v1053
  %vm1063 = vcmask 9216
  %1064 = vst.msk [vmem:[%s3 + $0x8] sm:$0x3] %vm1063, %v1058
  // Predicated region
  $region14: #{_forward_impl.1} parent=0 // pred_check
    _
  $region15: #{_forward_impl.1} parent=0 // pred_check_branch
    %1066 = sbr.rel (0) target = $region17
  $region16: #{_forward_impl.1} parent=0 // pred_region
    _
  $region17: #{_forward_impl.1} parent=0 // pred_fallthru
    _
  // Predicated region
  $region18: #{_forward_impl.1} parent=0 // pred_check
    _
  $region19: #{_forward_impl.1} parent=0 // pred_check_branch
    %1068 = sbr.rel (0) target = $region21
  $region20: #{_forward_impl.1} parent=0 // pred_region
    _
  $region21: #{_forward_impl.1} parent=0 // pred_fallthru
    _

</llo_original>
